<compile_context>
chip_gen: v7x
topology: tpu7x:2x2x1
jax: 0.10.0
libtpu: 0.0.40
codegen_flags: <defaults>
</compile_context>

<pallas_src>
import jax
import jax.numpy as jnp
from jax.experimental import pallas as pl
from jax.experimental.pallas import tpu as pltpu
import numpy as np


def critic_kernel(s_ref, a_ref, w1s_ref, w1a_ref, b1_ref,
                  w2_ref, b2_ref, w3_ref, b3_ref, o_ref):
    # l1: split matmul (state part + action part) replaces concat([s, a]) @ W1.
    h1 = (jnp.dot(s_ref[...], w1s_ref[...], preferred_element_type=jnp.float32)
          + jnp.dot(a_ref[...], w1a_ref[...], preferred_element_type=jnp.float32)
          + b1_ref[...])
    h1 = jnp.maximum(h1, 0.0)
    # l2
    h2 = jnp.dot(h1, w2_ref[...], preferred_element_type=jnp.float32) + b2_ref[...]
    h2 = jnp.maximum(h2, 0.0)
    # l3: single output unit -> lane reduction instead of a (32, 1) MXU push.
    q = jnp.sum(h2 * w3_ref[...], axis=-1, keepdims=True) + b3_ref[...]
    o_ref[...] = q.astype(o_ref.dtype)


def _round_up(x, m):
    return ((x + m - 1) // m) * m


def critic_forward(state, action, params, *, batch_tile=512):
    """state: (B, state_dim), action: (B, action_dim) -> (B, 1) f32."""
    w1, b1, w2, b2, w3, b3 = params
    state_dim = state.shape[1]
    action_dim = action.shape[1]
    h1_dim = w1.shape[1]   # 64
    h2_dim = w2.shape[1]   # 32

    # Split W1 so the kernel never needs the concatenated input, and present
    # W3 as a (1, 32) row for the lane-reduction final layer.
    w1_s = w1[:state_dim]
    w1_a = w1[state_dim:]
    w3_row = jnp.reshape(w3, (1, h2_dim))

    B = state.shape[0]
    # Batch tile: multiple of 8 (f32 sublane), capped at batch_tile.
    tb = min(_round_up(batch_tile, 8), _round_up(B, 8))
    Bp = _round_up(B, tb)
    if Bp != B:
        pad = Bp - B
        state = jnp.pad(state, ((0, pad), (0, 0)))
        action = jnp.pad(action, ((0, pad), (0, 0)))

    grid = (Bp // tb,)
    row = lambda i: (i, 0)       # batch-tiled operands
    const = lambda i: (0, 0)     # VMEM-resident weights / biases

    flops = 2 * B * (state_dim * h1_dim + action_dim * h1_dim + h1_dim * h2_dim + h2_dim)
    bytes_accessed = 4 * (Bp * (state_dim + action_dim + 1)
                          + w1.size + b1.size + w2.size + b2.size + w3.size + b3.size)

    out = pl.pallas_call(
        critic_kernel,
        out_shape=jax.ShapeDtypeStruct((Bp, 1), jnp.float32),
        grid=grid,
        in_specs=[
            pl.BlockSpec((tb, state_dim), row),
            pl.BlockSpec((tb, action_dim), row),
            pl.BlockSpec((state_dim, h1_dim), const),
            pl.BlockSpec((action_dim, h1_dim), const),
            pl.BlockSpec((1, h1_dim), const),
            pl.BlockSpec((h1_dim, h2_dim), const),
            pl.BlockSpec((1, h2_dim), const),
            pl.BlockSpec((1, h2_dim), const),
            pl.BlockSpec((1, 1), const),
        ],
        out_specs=pl.BlockSpec((tb, 1), row),
        compiler_params=pltpu.CompilerParams(
            dimension_semantics=("parallel",),
            vmem_limit_bytes=32 * 1024 * 1024,
        ),
        cost_estimate=pl.CostEstimate(
            flops=flops, transcendentals=0, bytes_accessed=bytes_accessed
        ),
    )(state, action, w1_s, w1_a, b1, w2, b2, w3_row, b3)

    return out[:B]


def init_critic_params(key, state_dim, action_dim):
    """Deterministic init mimicking torch.nn.Linear default (U(-1/sqrt(fan_in), +))."""
    dims = [(state_dim + action_dim, 64), (64, 32), (32, 1)]
    params = []
    for fan_in, fan_out in dims:
        kw, kb, key = jax.random.split(key, 3)
        bound = 1.0 / np.sqrt(fan_in)
        w = jax.random.uniform(kw, (fan_in, fan_out), jnp.float32, -bound, bound)
        b = jax.random.uniform(kb, (1, fan_out), jnp.float32, -bound, bound)
        params.extend([w, b])
    return tuple(params)


def critic_reference(state, action, params):
    w1, b1, w2, b2, w3, b3 = params
    x = jnp.concatenate([state, action], axis=1)
    h1 = jnp.maximum(x @ w1 + b1, 0.0)
    h2 = jnp.maximum(h1 @ w2 + b2, 0.0)
    return h2 @ w3 + b3


if __name__ == "__main__":
    key = jax.random.PRNGKey(0)
    k_state, k_action, k_params = jax.random.split(key, 3)

    batch, state_dim, action_dim = 8, 12, 4
    state = jax.random.normal(k_state, (batch, state_dim), jnp.float32)
    action = jax.random.normal(k_action, (batch, action_dim), jnp.float32)
    params = init_critic_params(k_params, state_dim, action_dim)

    # Primary check (single grid step).
    q = critic_forward(state, action, params)
    jax.block_until_ready(q)
    q_ref = critic_reference(state, action, params)
    np.testing.assert_allclose(np.asarray(q), np.asarray(q_ref), rtol=1e-5, atol=1e-5)

    # Secondary check: multi-step grid + ragged-batch padding path (B=20, tile=8 -> 3 steps).
    k_s2, k_a2 = jax.random.split(jax.random.PRNGKey(1), 2)
    state2 = jax.random.normal(k_s2, (20, state_dim), jnp.float32)
    action2 = jax.random.normal(k_a2, (20, action_dim), jnp.float32)
    q2 = critic_forward(state2, action2, params, batch_tile=8)
    jax.block_until_ready(q2)
    q2_ref = critic_reference(state2, action2, params)
    np.testing.assert_allclose(np.asarray(q2), np.asarray(q2_ref), rtol=1e-5, atol=1e-5)

    print("KERNEL_OK")
</pallas_src>

<mosaic_0001>
module attributes {stable_mosaic.version = 11 : i64} {
  func.func @critic_kernel(%arg0: i32, %arg1: memref<8x12xf32, #tpu.memory_space<vmem>>, %arg2: memref<8x4xf32, #tpu.memory_space<vmem>>, %arg3: memref<12x64xf32, #tpu.memory_space<vmem>>, %arg4: memref<4x64xf32, #tpu.memory_space<vmem>>, %arg5: memref<1x64xf32, #tpu.memory_space<vmem>>, %arg6: memref<64x32xf32, #tpu.memory_space<vmem>>, %arg7: memref<1x32xf32, #tpu.memory_space<vmem>>, %arg8: memref<1x32xf32, #tpu.memory_space<vmem>>, %arg9: memref<1x1xf32, #tpu.memory_space<vmem>>, %arg10: memref<8x1xf32, #tpu.memory_space<vmem>>) attributes {dimension_semantics = [#tpu.dimension_semantics<parallel>], iteration_bounds = array<i64: 1>, scalar_prefetch = 0 : i64, scratch_operands = 0 : i64, tpu.core_type = #tpu.core_type<tc>, window_params = [{transform_indices = @transform_0, window_bounds = array<i64: 8, 12>}, {transform_indices = @transform_1, window_bounds = array<i64: 8, 4>}, {pipeline_mode = #tpu.pipeline_mode<synchronous>, transform_indices = @transform_2, window_bounds = array<i64: 12, 64>}, {pipeline_mode = #tpu.pipeline_mode<synchronous>, transform_indices = @transform_3, window_bounds = array<i64: 4, 64>}, {pipeline_mode = #tpu.pipeline_mode<synchronous>, transform_indices = @transform_4, window_bounds = array<i64: 1, 64>}, {pipeline_mode = #tpu.pipeline_mode<synchronous>, transform_indices = @transform_5, window_bounds = array<i64: 64, 32>}, {pipeline_mode = #tpu.pipeline_mode<synchronous>, transform_indices = @transform_6, window_bounds = array<i64: 1, 32>}, {pipeline_mode = #tpu.pipeline_mode<synchronous>, transform_indices = @transform_7, window_bounds = array<i64: 1, 32>}, {pipeline_mode = #tpu.pipeline_mode<synchronous>, transform_indices = @transform_8, window_bounds = array<i64: 1, 1>}, {transform_indices = @transform_9, window_bounds = array<i64: 8, 1>}]} {
    %c0 = arith.constant 0 : index
    %c0_0 = arith.constant 0 : index
    %0 = vector.load %arg1[%c0, %c0_0] : memref<8x12xf32, #tpu.memory_space<vmem>>, vector<8x12xf32>
    %c0_1 = arith.constant 0 : index
    %c0_2 = arith.constant 0 : index
    %1 = vector.load %arg3[%c0_1, %c0_2] : memref<12x64xf32, #tpu.memory_space<vmem>>, vector<12x64xf32>
    %cst = arith.constant dense<0.000000e+00> : vector<8x64xf32>
    %2 = tpu.matmul %0, %1, %cst {dimension_numbers = #tpu.dot_dimension_numbers<[1], [0], [0], [1], [0, 0, 1, 1], [], []>} : vector<8x12xf32>, vector<12x64xf32>, vector<8x64xf32> -> vector<8x64xf32>
    %c0_3 = arith.constant 0 : index
    %c0_4 = arith.constant 0 : index
    %3 = vector.load %arg2[%c0_3, %c0_4] : memref<8x4xf32, #tpu.memory_space<vmem>>, vector<8x4xf32>
    %c0_5 = arith.constant 0 : index
    %c0_6 = arith.constant 0 : index
    %4 = vector.load %arg4[%c0_5, %c0_6] : memref<4x64xf32, #tpu.memory_space<vmem>>, vector<4x64xf32>
    %cst_7 = arith.constant dense<0.000000e+00> : vector<8x64xf32>
    %5 = tpu.matmul %3, %4, %cst_7 {dimension_numbers = #tpu.dot_dimension_numbers<[1], [0], [0], [1], [0, 0, 1, 1], [], []>} : vector<8x4xf32>, vector<4x64xf32>, vector<8x64xf32> -> vector<8x64xf32>
    %6 = arith.addf %2, %5 : vector<8x64xf32>
    %c0_8 = arith.constant 0 : index
    %c0_9 = arith.constant 0 : index
    %7 = vector.load %arg5[%c0_8, %c0_9] : memref<1x64xf32, #tpu.memory_space<vmem>>, vector<1x64xf32>
    %8 = vector.broadcast %7 : vector<1x64xf32> to vector<8x64xf32>
    %9 = arith.addf %6, %8 : vector<8x64xf32>
    %cst_10 = arith.constant 0.000000e+00 : f32
    %10 = vector.broadcast %cst_10 : f32 to vector<8x64xf32>
    %11 = arith.maximumf %9, %10 : vector<8x64xf32>
    %c0_11 = arith.constant 0 : index
    %c0_12 = arith.constant 0 : index
    %12 = vector.load %arg6[%c0_11, %c0_12] : memref<64x32xf32, #tpu.memory_space<vmem>>, vector<64x32xf32>
    %cst_13 = arith.constant dense<0.000000e+00> : vector<8x32xf32>
    %13 = tpu.matmul %11, %12, %cst_13 {dimension_numbers = #tpu.dot_dimension_numbers<[1], [0], [0], [1], [0, 0, 1, 1], [], []>} : vector<8x64xf32>, vector<64x32xf32>, vector<8x32xf32> -> vector<8x32xf32>
    %c0_14 = arith.constant 0 : index
    %c0_15 = arith.constant 0 : index
    %14 = vector.load %arg7[%c0_14, %c0_15] : memref<1x32xf32, #tpu.memory_space<vmem>>, vector<1x32xf32>
    %15 = vector.broadcast %14 : vector<1x32xf32> to vector<8x32xf32>
    %16 = arith.addf %13, %15 : vector<8x32xf32>
    %cst_16 = arith.constant 0.000000e+00 : f32
    %17 = vector.broadcast %cst_16 : f32 to vector<8x32xf32>
    %18 = arith.maximumf %16, %17 : vector<8x32xf32>
    %c0_17 = arith.constant 0 : index
    %c0_18 = arith.constant 0 : index
    %19 = vector.load %arg8[%c0_17, %c0_18] : memref<1x32xf32, #tpu.memory_space<vmem>>, vector<1x32xf32>
    %20 = vector.broadcast %19 : vector<1x32xf32> to vector<8x32xf32>
    %21 = arith.mulf %18, %20 : vector<8x32xf32>
    %cst_19 = arith.constant dense<0.000000e+00> : vector<8xf32>
    %22 = vector.multi_reduction <add>, %21, %cst_19 [1] : vector<8x32xf32> to vector<8xf32>
    %23 = vector.shape_cast %22 : vector<8xf32> to vector<8x1xf32>
    %c0_20 = arith.constant 0 : index
    %c0_21 = arith.constant 0 : index
    %24 = vector.load %arg9[%c0_20, %c0_21] : memref<1x1xf32, #tpu.memory_space<vmem>>, vector<1x1xf32>
    %25 = vector.broadcast %24 : vector<1x1xf32> to vector<8x1xf32>
    %26 = arith.addf %23, %25 : vector<8x1xf32>
    %c0_22 = arith.constant 0 : index
    %c0_23 = arith.constant 0 : index
    %27 = vector.load %arg10[%c0_22, %c0_23] : memref<8x1xf32, #tpu.memory_space<vmem>>, vector<8x1xf32>
    tpu.vector_store %arg10[%c0_22, %c0_23], %26 {strides = array<i32>} : memref<8x1xf32, #tpu.memory_space<vmem>>, vector<8x1xf32>,
    return
  }
  func.func @transform_0(%arg0: i32) -> (i32, i32) {
    %c0_i32 = arith.constant 0 : i32
    %c0_i32_0 = arith.constant 0 : i32
    return %arg0, %c0_i32 : i32, i32
  }
  func.func @transform_1(%arg0: i32) -> (i32, i32) {
    %c0_i32 = arith.constant 0 : i32
    %c0_i32_0 = arith.constant 0 : i32
    return %arg0, %c0_i32 : i32, i32
  }
  func.func @transform_2(%arg0: i32) -> (i32, i32) {
    %c0_i32 = arith.constant 0 : i32
    %c0_i32_0 = arith.constant 0 : i32
    %c0_i32_1 = arith.constant 0 : i32
    return %c0_i32, %c0_i32_0 : i32, i32
  }
  func.func @transform_3(%arg0: i32) -> (i32, i32) {
    %c0_i32 = arith.constant 0 : i32
    %c0_i32_0 = arith.constant 0 : i32
    %c0_i32_1 = arith.constant 0 : i32
    return %c0_i32, %c0_i32_0 : i32, i32
  }
  func.func @transform_4(%arg0: i32) -> (i32, i32) {
    %c0_i32 = arith.constant 0 : i32
    %c0_i32_0 = arith.constant 0 : i32
    %c0_i32_1 = arith.constant 0 : i32
    return %c0_i32, %c0_i32_0 : i32, i32
  }
  func.func @transform_5(%arg0: i32) -> (i32, i32) {
    %c0_i32 = arith.constant 0 : i32
    %c0_i32_0 = arith.constant 0 : i32
    %c0_i32_1 = arith.constant 0 : i32
    return %c0_i32, %c0_i32_0 : i32, i32
  }
  func.func @transform_6(%arg0: i32) -> (i32, i32) {
    %c0_i32 = arith.constant 0 : i32
    %c0_i32_0 = arith.constant 0 : i32
    %c0_i32_1 = arith.constant 0 : i32
    return %c0_i32, %c0_i32_0 : i32, i32
  }
  func.func @transform_7(%arg0: i32) -> (i32, i32) {
    %c0_i32 = arith.constant 0 : i32
    %c0_i32_0 = arith.constant 0 : i32
    %c0_i32_1 = arith.constant 0 : i32
    return %c0_i32, %c0_i32_0 : i32, i32
  }
  func.func @transform_8(%arg0: i32) -> (i32, i32) {
    %c0_i32 = arith.constant 0 : i32
    %c0_i32_0 = arith.constant 0 : i32
    %c0_i32_1 = arith.constant 0 : i32
    return %c0_i32, %c0_i32_0 : i32, i32
  }
  func.func @transform_9(%arg0: i32) -> (i32, i32) {
    %c0_i32 = arith.constant 0 : i32
    %c0_i32_0 = arith.constant 0 : i32
    return %arg0, %c0_i32 : i32, i32
  }
}

</mosaic_0001>

<llo_original>
// kernel: tpu_custom_call.1
$region0: #{tpu_custom_call.1}
  #allocation0 [shape = 'u32[]', space=smem, size = 0x4, offset = 0x4, fixed_abs, tag = 'smem constant byte address 0x4 - core index']
  #allocation1 [shape = 'u32[144,128]{1,0:T(1,128)}', space=vmem, size = 0x12000, scoped, tag = 'internal scratch']
  #allocation2 [shape = 'f32[1,1]{1,0:T(1,128)S(1)}', space=vmem, size = 0x200, scoped, tag = 'scoped memory for tpu_custom_call.1']
  %s0 = inlined_call_operand.vmem [shape: f32[8,12], index: 0, kind: input, shape index: {}]
  %s1 = inlined_call_operand.vmem [shape: f32[8,4], index: 1, kind: input, shape index: {}]
  %s2 = inlined_call_operand.vmem [shape: f32[12,64], index: 2, kind: input, shape index: {}]
  %s3 = inlined_call_operand.vmem [shape: f32[4,64], index: 3, kind: input, shape index: {}]
  %s4 = inlined_call_operand.vmem [shape: f32[1,64], index: 4, kind: input, shape index: {}]
  %s5 = inlined_call_operand.vmem [shape: f32[64,32], index: 5, kind: input, shape index: {}]
  %s6 = inlined_call_operand.vmem [shape: f32[1,32], index: 6, kind: input, shape index: {}]
  %s7 = inlined_call_operand.vmem [shape: f32[1,32], index: 7, kind: input, shape index: {}]
  %s8 = inlined_call_operand.<no memory space> [shape: f32[1,1], index: 8, kind: input, shape index: {}]
  %s9 = inlined_call_operand.vmem [shape: f32[8,1], index: 9, kind: output, shape index: {}]
  %s10 = sld [smem:[#allocation0]]
  $region46: #{tpu_custom_call.1} parent=0
    _
  %s12 = ssub.s32 1, %s10
  %s13 = scalar_select 0, %s12, %s10
  %v14 = vstv %s8
  %15 = vst [vmem:[#allocation2] sm:$0x1] %v14
  // Predicated region
  $region2: #{tpu_custom_call.1} parent=0 // pred_check
    _
  $region3: #{tpu_custom_call.1} parent=0 // pred_check_branch
    %17 = sbr.rel (0) target = $region5
  $region4: #{tpu_custom_call.1} parent=0 // pred_region
    _
  $region5: #{tpu_custom_call.1} parent=0 // pred_fallthru
    _
  // Predicated region
  $region6: #{tpu_custom_call.1} parent=0 // pred_check
    _
  $region7: #{tpu_custom_call.1} parent=0 // pred_check_branch
    %19 = sbr.rel (0) target = $region9
  $region8: #{tpu_custom_call.1} parent=0 // pred_region
    _
  $region9: #{tpu_custom_call.1} parent=0 // pred_fallthru
    _
  // Predicated region
  $region10: #{tpu_custom_call.1} parent=0 // pred_check
    _
  $region11: #{tpu_custom_call.1} parent=0 // pred_check_branch
    %21 = sbr.rel (0) target = $region13
  $region12: #{tpu_custom_call.1} parent=0 // pred_region
    _
  $region13: #{tpu_custom_call.1} parent=0 // pred_fallthru
    _
  // Predicated region
  $region14: #{tpu_custom_call.1} parent=0 // pred_check
    _
  $region15: #{tpu_custom_call.1} parent=0 // pred_check_branch
    %23 = sbr.rel (0) target = $region17
  $region16: #{tpu_custom_call.1} parent=0 // pred_region
    _
  $region17: #{tpu_custom_call.1} parent=0 // pred_fallthru
    _
  // Predicated region
  $region18: #{tpu_custom_call.1} parent=0 // pred_check
    _
  $region19: #{tpu_custom_call.1} parent=0 // pred_check_branch
    %25 = sbr.rel (0) target = $region21
  $region20: #{tpu_custom_call.1} parent=0 // pred_region
    _
  $region21: #{tpu_custom_call.1} parent=0 // pred_fallthru
    _
  // Predicated region
  $region22: #{tpu_custom_call.1} parent=0 // pred_check
    _
  $region23: #{tpu_custom_call.1} parent=0 // pred_check_branch
    %27 = sbr.rel (0) target = $region25
  $region24: #{tpu_custom_call.1} parent=0 // pred_region
    _
  $region25: #{tpu_custom_call.1} parent=0 // pred_fallthru
    _
  // Predicated region
  $region26: #{tpu_custom_call.1} parent=0 // pred_check
    _
  $region27: #{tpu_custom_call.1} parent=0 // pred_check_branch
    %29 = sbr.rel (0) target = $region29
  $region28: #{tpu_custom_call.1} parent=0 // pred_region
    _
  $region29: #{tpu_custom_call.1} parent=0 // pred_fallthru
    _
  // Predicated region
  $region30: #{tpu_custom_call.1} parent=0 // pred_check
    _
  $region31: #{tpu_custom_call.1} parent=0 // pred_check_branch
    %31 = sbr.rel (0) target = $region33
  $region32: #{tpu_custom_call.1} parent=0 // pred_region
    _
  $region33: #{tpu_custom_call.1} parent=0 // pred_fallthru
    _
  // Predicated region
  $region34: #{tpu_custom_call.1} parent=0 // pred_check
    _
  $region35: #{tpu_custom_call.1} parent=0 // pred_check_branch
    %33 = sbr.rel (0) target = $region37
  $region36: #{tpu_custom_call.1} parent=0 // pred_region
    _
  $region37: #{tpu_custom_call.1} parent=0 // pred_fallthru
    _
  %v34 = vld [vmem:[%s0] sm:$0xff]
  %v35 = vld [vmem:[%s2] sm:$0xff]
  %v36 = vld [vmem:[%s2 + $0x8] sm:$0xf]
  %v37 = vld [vmem:[%s1] sm:$0xff]
  %v38 = vld [vmem:[%s3] sm:$0xf]
  %vm39 = vcmask 31744
  %v41 = vsel %vm39, %v37, 0
  %vm43 = vcmask 1043456
  %v45 = vsel %vm43, %v38, 0
  %47 = vmatprep.subr.mxu0 0.0
  %48 = vmatpush1.msra.mxu0 %v45
  %49 = vmatprep.subr.mxu0 0.0
  %50 = vmatpush1.msra.mxu0 0.0
  %51 = vmatprep.subr.mxu0 0.0
  %52 = vmatpush1.msra.mxu0 0.0
  %53 = vmatprep.subr.mxu0 0.0
  %54 = vmatpush1.msra.mxu0 0.0
  %55 = vmatprep.subr.mxu0 0.0
  %56 = vmatpush1.msra.mxu0 0.0
  %57 = vmatprep.subr.mxu0 0.0
  %58 = vmatpush1.msra.mxu0 0.0
  %59 = vmatprep.subr.mxu0 0.0
  %60 = vmatpush1.msra.mxu0 0.0
  %61 = vmatprep.subr.mxu0 0.0
  %62 = vmatpush1.msra.mxu0 0.0
  %63 = vmatprep.subr.mxu0 0.0
  %64 = vmatpush1.msra.mxu0 0.0
  %65 = vmatprep.subr.mxu0 0.0
  %66 = vmatpush1.msra.mxu0 0.0
  %67 = vmatprep.subr.mxu0 0.0
  %68 = vmatpush1.msra.mxu0 0.0
  %69 = vmatprep.subr.mxu0 0.0
  %70 = vmatpush1.msra.mxu0 0.0
  %71 = vmatprep.subr.mxu0 0.0
  %72 = vmatpush1.msra.mxu0 0.0
  %73 = vmatprep.subr.mxu0 0.0
  %74 = vmatpush1.msra.mxu0 0.0
  %75 = vmatprep.subr.mxu0 0.0
  %76 = vmatpush1.msra.mxu0 0.0
  %77 = vmatprep.subr.mxu0 0.0
  %78 = vmatpush1.msra.mxu0 0.0
  %79 = vmatprep.subr.mxu0 0.0
  %80 = vmatpush1.msra.mxu0 0.0
  %81 = vmatprep.subr.mxu0 0.0
  %82 = vmatpush1.msra.mxu0 0.0
  %83 = vmatprep.subr.mxu0 0.0
  %84 = vmatpush1.msra.mxu0 0.0
  %85 = vmatprep.subr.mxu0 0.0
  %86 = vmatpush1.msra.mxu0 0.0
  %87 = vmatprep.subr.mxu0 0.0
  %88 = vmatpush1.msra.mxu0 0.0
  %89 = vmatprep.subr.mxu0 0.0
  %90 = vmatpush1.msra.mxu0 0.0
  %91 = vmatprep.subr.mxu0 0.0
  %92 = vmatpush1.msra.mxu0 0.0
  %93 = vmatprep.subr.mxu0 0.0
  %94 = vmatpush1.msra.mxu0 0.0
  %95 = vmatprep.subr.mxu0 0.0
  %96 = vmatpush1.msra.mxu0 0.0
  %97 = vmatprep.subr.mxu0 0.0
  %98 = vmatpush1.msra.mxu0 0.0
  %99 = vmatprep.subr.mxu0 0.0
  %100 = vmatpush1.msra.mxu0 0.0
  %101 = vmatprep.subr.mxu0 0.0
  %102 = vmatpush1.msra.mxu0 0.0
  %103 = vmatprep.subr.mxu0 0.0
  %104 = vmatpush1.msra.mxu0 0.0
  %105 = vmatprep.subr.mxu0 0.0
  %106 = vmatpush1.msra.mxu0 0.0
  %107 = vmatprep.subr.mxu0 0.0
  %108 = vmatpush1.msra.mxu0 0.0
  %109 = vmatprep.subr.mxu0 0.0
  %110 = vmatpush1.msra.mxu0 0.0
  %111 = vmatprep.mubr.f32.mxu0 0.0
  %112 = vmatmul.mubr.f32.gmra.mrb[0].mxu0 %v41
  %v113 = vpop.f32.mrb[0].mxu0
  %v114 = vadd.f32 0.0, %v113
  %v115 = vpop.f32.mrb[0].mxu0
  %116 = vdwg.mxu0
  %vm117 = vcmask 97280
  %v119 = vsel %vm117, %v34, 0
  %v122 = vsel %vm43, %v36, 0
  %124 = vmatprep.subr.mxu0 0.0
  %125 = vmatpush1.msra.mxu0 %v35
  %126 = vmatprep.subr.mxu0 0.0
  %127 = vmatpush1.msra.mxu0 %v122
  %128 = vmatprep.subr.mxu0 0.0
  %129 = vmatpush1.msra.mxu0 0.0
  %130 = vmatprep.subr.mxu0 0.0
  %131 = vmatpush1.msra.mxu0 0.0
  %132 = vmatprep.subr.mxu0 0.0
  %133 = vmatpush1.msra.mxu0 0.0
  %134 = vmatprep.subr.mxu0 0.0
  %135 = vmatpush1.msra.mxu0 0.0
  %136 = vmatprep.subr.mxu0 0.0
  %137 = vmatpush1.msra.mxu0 0.0
  %138 = vmatprep.subr.mxu0 0.0
  %139 = vmatpush1.msra.mxu0 0.0
  %140 = vmatprep.subr.mxu0 0.0
  %141 = vmatpush1.msra.mxu0 0.0
  %142 = vmatprep.subr.mxu0 0.0
  %143 = vmatpush1.msra.mxu0 0.0
  %144 = vmatprep.subr.mxu0 0.0
  %145 = vmatpush1.msra.mxu0 0.0
  %146 = vmatprep.subr.mxu0 0.0
  %147 = vmatpush1.msra.mxu0 0.0
  %148 = vmatprep.subr.mxu0 0.0
  %149 = vmatpush1.msra.mxu0 0.0
  %150 = vmatprep.subr.mxu0 0.0
  %151 = vmatpush1.msra.mxu0 0.0
  %152 = vmatprep.subr.mxu0 0.0
  %153 = vmatpush1.msra.mxu0 0.0
  %154 = vmatprep.subr.mxu0 0.0
  %155 = vmatpush1.msra.mxu0 0.0
  %156 = vmatprep.subr.mxu0 0.0
  %157 = vmatpush1.msra.mxu0 0.0
  %158 = vmatprep.subr.mxu0 0.0
  %159 = vmatpush1.msra.mxu0 0.0
  %160 = vmatprep.subr.mxu0 0.0
  %161 = vmatpush1.msra.mxu0 0.0
  %162 = vmatprep.subr.mxu0 0.0
  %163 = vmatpush1.msra.mxu0 0.0
  %164 = vmatprep.subr.mxu0 0.0
  %165 = vmatpush1.msra.mxu0 0.0
  %166 = vmatprep.subr.mxu0 0.0
  %167 = vmatpush1.msra.mxu0 0.0
  %168 = vmatprep.subr.mxu0 0.0
  %169 = vmatpush1.msra.mxu0 0.0
  %170 = vmatprep.subr.mxu0 0.0
  %171 = vmatpush1.msra.mxu0 0.0
  %172 = vmatprep.subr.mxu0 0.0
  %173 = vmatpush1.msra.mxu0 0.0
  %174 = vmatprep.subr.mxu0 0.0
  %175 = vmatpush1.msra.mxu0 0.0
  %176 = vmatprep.subr.mxu0 0.0
  %177 = vmatpush1.msra.mxu0 0.0
  %178 = vmatprep.subr.mxu0 0.0
  %179 = vmatpush1.msra.mxu0 0.0
  %180 = vmatprep.subr.mxu0 0.0
  %181 = vmatpush1.msra.mxu0 0.0
  %182 = vmatprep.subr.mxu0 0.0
  %183 = vmatpush1.msra.mxu0 0.0
  %184 = vmatprep.subr.mxu0 0.0
  %185 = vmatpush1.msra.mxu0 0.0
  %186 = vmatprep.subr.mxu0 0.0
  %187 = vmatpush1.msra.mxu0 0.0
  %188 = vmatprep.mubr.f32.mxu0 0.0
  %189 = vmatmul.mubr.f32.gmra.mrb[0].mxu0 %v119
  %v190 = vpop.f32.mrb[0].mxu0
  %v191 = vadd.f32 %v114, %v190
  %v192 = vpop.f32.mrb[0].mxu0
  %193 = vdwg.mxu0
  %v194 = vld [vmem:[%s4] sm:$0x1]
  %v196 = vlaneseq
  %v197 = vshrl.u32 %v196, 7
  %v198 = vsub.s32 0, %v197
  %v199 = vrot.slane %v194, %v198
  %v201 = vadd.f32 %v191, %v199
  %v202 = vmax.f32 %v201, 0.0
  %v203 = vld [vmem:[%s5] sm:$0xff]
  %v204 = vld [vmem:[%s5 + $0x8] sm:$0xff]
  %v205 = vld [vmem:[%s5 + $0x10] sm:$0xff]
  %v206 = vld [vmem:[%s5 + $0x18] sm:$0xff]
  %v207 = vld [vmem:[%s5 + $0x20] sm:$0xff]
  %v208 = vld [vmem:[%s5 + $0x28] sm:$0xff]
  %v209 = vld [vmem:[%s5 + $0x30] sm:$0xff]
  %v210 = vld [vmem:[%s5 + $0x38] sm:$0xff]
  %v211 = vld [vmem:[%s6] sm:$0x1]
  %v213 = vlaneseq
  %v214 = vshrl.u32 %v213, 7
  %v215 = vsub.s32 0, %v214
  %v216 = vrot.slane %v211, %v215
  %vm218 = vcmask 523264
  %v220 = vsel %vm218, %v202, 0
  %222 = vmatprep.subr.mxu0 0.0
  %223 = vmatpush1.msra.mxu0 %v203
  %224 = vmatprep.subr.mxu0 0.0
  %225 = vmatpush1.msra.mxu0 %v204
  %226 = vmatprep.subr.mxu0 0.0
  %227 = vmatpush1.msra.mxu0 %v205
  %228 = vmatprep.subr.mxu0 0.0
  %229 = vmatpush1.msra.mxu0 %v206
  %230 = vmatprep.subr.mxu0 0.0
  %231 = vmatpush1.msra.mxu0 %v207
  %232 = vmatprep.subr.mxu0 0.0
  %233 = vmatpush1.msra.mxu0 %v208
  %234 = vmatprep.subr.mxu0 0.0
  %235 = vmatpush1.msra.mxu0 %v209
  %236 = vmatprep.subr.mxu0 0.0
  %237 = vmatpush1.msra.mxu0 %v210
  %238 = vmatprep.subr.mxu0 0.0
  %239 = vmatpush1.msra.mxu0 0.0
  %240 = vmatprep.subr.mxu0 0.0
  %241 = vmatpush1.msra.mxu0 0.0
  %242 = vmatprep.subr.mxu0 0.0
  %243 = vmatpush1.msra.mxu0 0.0
  %244 = vmatprep.subr.mxu0 0.0
  %245 = vmatpush1.msra.mxu0 0.0
  %246 = vmatprep.subr.mxu0 0.0
  %247 = vmatpush1.msra.mxu0 0.0
  %248 = vmatprep.subr.mxu0 0.0
  %249 = vmatpush1.msra.mxu0 0.0
  %250 = vmatprep.subr.mxu0 0.0
  %251 = vmatpush1.msra.mxu0 0.0
  %252 = vmatprep.subr.mxu0 0.0
  %253 = vmatpush1.msra.mxu0 0.0
  %254 = vmatprep.subr.mxu0 0.0
  %255 = vmatpush1.msra.mxu0 0.0
  %256 = vmatprep.subr.mxu0 0.0
  %257 = vmatpush1.msra.mxu0 0.0
  %258 = vmatprep.subr.mxu0 0.0
  %259 = vmatpush1.msra.mxu0 0.0
  %260 = vmatprep.subr.mxu0 0.0
  %261 = vmatpush1.msra.mxu0 0.0
  %262 = vmatprep.subr.mxu0 0.0
  %263 = vmatpush1.msra.mxu0 0.0
  %264 = vmatprep.subr.mxu0 0.0
  %265 = vmatpush1.msra.mxu0 0.0
  %266 = vmatprep.subr.mxu0 0.0
  %267 = vmatpush1.msra.mxu0 0.0
  %268 = vmatprep.subr.mxu0 0.0
  %269 = vmatpush1.msra.mxu0 0.0
  %270 = vmatprep.subr.mxu0 0.0
  %271 = vmatpush1.msra.mxu0 0.0
  %272 = vmatprep.subr.mxu0 0.0
  %273 = vmatpush1.msra.mxu0 0.0
  %274 = vmatprep.subr.mxu0 0.0
  %275 = vmatpush1.msra.mxu0 0.0
  %276 = vmatprep.subr.mxu0 0.0
  %277 = vmatpush1.msra.mxu0 0.0
  %278 = vmatprep.subr.mxu0 0.0
  %279 = vmatpush1.msra.mxu0 0.0
  %280 = vmatprep.subr.mxu0 0.0
  %281 = vmatpush1.msra.mxu0 0.0
  %282 = vmatprep.subr.mxu0 0.0
  %283 = vmatpush1.msra.mxu0 0.0
  %284 = vmatprep.subr.mxu0 0.0
  %285 = vmatpush1.msra.mxu0 0.0
  %286 = vmatprep.mubr.f32.mxu0 0.0
  %287 = vmatmul.mubr.f32.gmra.mrb[0].mxu0 %v220
  %v288 = vpop.f32.mrb[0].mxu0
  %v289 = vadd.f32 %v216, %v288
  %v290 = vpop.f32.mrb[0].mxu0
  %291 = vdwg.mxu0
  %v292 = vmax.f32 %v289, 0.0
  %v293 = vld [vmem:[%s7] sm:$0x1]
  %v295 = vlaneseq
  %v296 = vshrl.u32 %v295, 7
  %v297 = vsub.s32 0, %v296
  %v298 = vrot.slane %v293, %v297
  %v300 = vmul.f32 %v292, %v298
  %vm301 = vcmask 261120
  %v302 = vsel %vm301, %v300, 0.0
  %303 = vadd.xlane.f32.xlu0 %v302
  %v304 = vpop.xlane.xlu0 %303
  %v305 = vld [vmem:[#allocation2] sm:$0x1]
  %v307 = vlaneseq
  %v308 = vshrl.u32 %v307, 7
  %v309 = vsub.s32 0, %v308
  %v310 = vrot.slane %v305, %v309
  %v312 = vadd.f32 %v304, %v310
  %vm313 = vcmask 7168
  %314 = vst.msk [vmem:[%s9] sm:$0xff] %vm313, %v312
  // Predicated region
  $region38: #{tpu_custom_call.1} parent=0 // pred_check
    _
  $region39: #{tpu_custom_call.1} parent=0 // pred_check_branch
    %316 = sbr.rel (0) target = $region41
  $region40: #{tpu_custom_call.1} parent=0 // pred_region
    _
  $region41: #{tpu_custom_call.1} parent=0 // pred_fallthru
    _
  // Predicated region
  $region42: #{tpu_custom_call.1} parent=0 // pred_check
    _
  $region43: #{tpu_custom_call.1} parent=0 // pred_check_branch
    %318 = sbr.rel (0) target = $region45
  $region44: #{tpu_custom_call.1} parent=0 // pred_region
    _
  $region45: #{tpu_custom_call.1} parent=0 // pred_fallthru
    _

</llo_original>
